<compile_context>
chip_gen: v7x
topology: tpu7x:2x2x1
jax: 0.10.0
libtpu: 0.0.40
codegen_flags: <defaults>
</compile_context>

<pallas_src>
import functools

import jax
import jax.numpy as jnp
from jax.experimental import pallas as pl
from jax.experimental.pallas import tpu as pltpu


def _round_up(x, m):
    return ((x + m - 1) // m) * m


# ----------------------------------------------------------------------------
# Kernel
# ----------------------------------------------------------------------------
def _qguided_kernel(x_ref,
                    w1_ref, b1_ref,
                    w2_ref, b2_ref,
                    wh_ref, bh_ref,
                    out_ref, *, action_dim):
    """Fused MLP trunk + single fused-head matmul + masked softmax.

    Output slab columns: [0:A) actor probs | [A] value | [A+1:2A+1) q | pad.
    Slab is stored lane-dense in bf16.
    """
    a = action_dim
    f32 = jnp.float32

    x = x_ref[...]                                        # (TM, S) bf16 (pre-cast)

    # Shared trunk: bf16 matmul inputs, f32 MXU accumulate, f32 bias/ReLU.
    h1 = jnp.dot(x, w1_ref[...], preferred_element_type=f32) + b1_ref[...]
    h1 = jnp.maximum(h1, 0.0)
    h2 = jnp.dot(h1.astype(jnp.bfloat16), w2_ref[...],
                 preferred_element_type=f32) + b2_ref[...]
    h2 = jnp.maximum(h2, 0.0)

    # One fused head matmul: (TM, h2) @ (h2, HPAD) -> (TM, HPAD)
    head = jnp.dot(h2.astype(jnp.bfloat16), wh_ref[...],
                   preferred_element_type=f32) + bh_ref[...]

    # Masked softmax over the first `action_dim` lanes only; other lanes pass
    # through unchanged (value, q, zero padding).  Fully vectorized over the
    # 128-lane slab -> single unmasked lane-dense store.
    col = jax.lax.broadcasted_iota(jnp.int32, head.shape, 1)
    is_actor = col < a
    logits = jnp.where(is_actor, head, -jnp.inf)
    m = jnp.max(logits, axis=-1, keepdims=True)
    e = jnp.where(is_actor, jnp.exp(logits - m), 0.0)
    denom = jnp.sum(e, axis=-1, keepdims=True)
    r = pl.reciprocal(denom, approx=True)                 # EUP slot
    r = r * (2.0 - denom * r)                             # 1 Newton step on (TM,1)
    probs = e * r

    out_ref[...] = jnp.where(is_actor, probs, head).astype(out_ref.dtype)


# ----------------------------------------------------------------------------
# Wrapper
# ----------------------------------------------------------------------------
def qguided_forward(state, kparams, *, tm_max=1024):
    """state: (B, state_dim) f32.  kparams: output of pack_params()."""
    B, S = state.shape
    A = int(kparams["action_dim"])
    HPAD = kparams["wh"].shape[1]

    ALIGN = 16  # sublane multiple that also covers bf16 packing (16, 128)

    # One-time bf16 cast of the streamed input (halves input DMA bytes).
    x = state.astype(jnp.bfloat16)

    # Tile-count-first tiling: pick how many tiles, then the (aligned) tile
    # size, so awkward batch sizes don't pad up to a whole extra tile.
    B_aln = _round_up(max(B, 1), ALIGN)
    n_tiles = pl.cdiv(B_aln, tm_max)
    if B_aln >= 128:
        # Guarantee >=2 grid steps so the "parallel" axis can shard across the
        # two TensorCores on v7x; one extra step is negligible on v5e/v6e.
        n_tiles = max(n_tiles, 2)
    TM = _round_up(pl.cdiv(B_aln, n_tiles), ALIGN)
    B_pad = n_tiles * TM
    if B_pad != B:
        x = jnp.pad(x, ((0, B_pad - B), (0, 0)))

    def resident(arr):  # full-array block, constant index -> stays in VMEM
        return pl.BlockSpec(arr.shape, lambda i: (0, 0))

    in_specs = [
        pl.BlockSpec((TM, S), lambda i: (i, 0)),           # state tile streams
        resident(kparams["w1"]), resident(kparams["b1"]),
        resident(kparams["w2"]), resident(kparams["b2"]),
        resident(kparams["wh"]), resident(kparams["bh"]),
    ]
    out_spec = pl.BlockSpec((TM, HPAD), lambda i: (i, 0))  # lane-dense bf16 slab

    kernel = functools.partial(_qguided_kernel, action_dim=A)

    out = pl.pallas_call(
        kernel,
        out_shape=jax.ShapeDtypeStruct((B_pad, HPAD), jnp.bfloat16),
        grid_spec=pltpu.PrefetchScalarGridSpec(
            num_scalar_prefetch=0,
            grid=(n_tiles,),
            in_specs=in_specs,
            out_specs=out_spec,
        ),
        compiler_params=pltpu.CompilerParams(
            dimension_semantics=("parallel",),             # dual-TC on v7x
        ),
    )(x,
      kparams["w1"], kparams["b1"],
      kparams["w2"], kparams["b2"],
      kparams["wh"], kparams["bh"])

    # Slice the slab ONCE, then split; single f32 up-cast of the narrow core.
    head = out[:B, :2 * A + 1].astype(jnp.float32)
    probs = head[:, :A]
    value = head[:, A:A + 1]
    q = head[:, A + 1:]
    return probs, value, q


# ----------------------------------------------------------------------------
# Parameter construction
# ----------------------------------------------------------------------------
def init_params(key, state_dim, action_dim, hidden_dim=128):
    """f32 'PyTorch-equivalent' params: orthogonal weights (gain=1), zero bias."""
    h2 = hidden_dim // 2
    ortho = jax.nn.initializers.orthogonal(scale=1.0)
    k1, k2, k3, k4, k5 = jax.random.split(key, 5)
    return {
        "w1": ortho(k1, (state_dim, hidden_dim), jnp.float32),
        "b1": jnp.zeros((1, hidden_dim), jnp.float32),
        "w2": ortho(k2, (hidden_dim, h2), jnp.float32),
        "b2": jnp.zeros((1, h2), jnp.float32),
        "wa": ortho(k3, (h2, action_dim), jnp.float32),
        "ba": jnp.zeros((1, action_dim), jnp.float32),
        "wc": ortho(k4, (h2, 1), jnp.float32),
        "bc": jnp.zeros((1, 1), jnp.float32),
        "wq": ortho(k5, (h2, action_dim), jnp.float32),
        "bq": jnp.zeros((1, action_dim), jnp.float32),
    }


def pack_params(raw, action_dim):
    """Fuse the three heads into one lane-padded weight/bias; cast weights bf16."""
    A = action_dim
    h2 = raw["w2"].shape[1]
    H = 2 * A + 1
    HPAD = _round_up(max(H, 128), 128)     # lane-dense output slab width

    wh = jnp.zeros((h2, HPAD), jnp.float32)
    wh = wh.at[:, :A].set(raw["wa"])
    wh = wh.at[:, A:A + 1].set(raw["wc"])
    wh = wh.at[:, A + 1:H].set(raw["wq"])

    bh = jnp.zeros((1, HPAD), jnp.float32)
    bh = bh.at[:, :A].set(raw["ba"])
    bh = bh.at[:, A:A + 1].set(raw["bc"])
    bh = bh.at[:, A + 1:H].set(raw["bq"])

    return {
        "w1": raw["w1"].astype(jnp.bfloat16),
        "b1": raw["b1"],
        "w2": raw["w2"].astype(jnp.bfloat16),
        "b2": raw["b2"],
        "wh": wh.astype(jnp.bfloat16),
        "bh": bh,
        "action_dim": A,
    }


# ----------------------------------------------------------------------------
# References
# ----------------------------------------------------------------------------
def reference_forward(state, raw):
    """Pure-f32 JAX reference mirroring the PyTorch module."""
    h1 = jax.nn.relu(state @ raw["w1"] + raw["b1"])
    h2 = jax.nn.relu(h1 @ raw["w2"] + raw["b2"])
    probs = jax.nn.softmax(h2 @ raw["wa"] + raw["ba"], axis=-1)
    value = h2 @ raw["wc"] + raw["bc"]
    q = h2 @ raw["wq"] + raw["bq"]
    return probs, value, q


def reference_forward_matched(state, kp, action_dim):
    """Reference with the same bf16-matmul / f32-accumulate precision as the kernel
    (the kernel additionally rounds its output slab to bf16 at the store)."""
    A = action_dim
    f32 = jnp.float32
    h1 = jnp.maximum(jnp.dot(state.astype(jnp.bfloat16), kp["w1"],
                             preferred_element_type=f32) + kp["b1"], 0.0)
    h2 = jnp.maximum(jnp.dot(h1.astype(jnp.bfloat16), kp["w2"],
                             preferred_element_type=f32) + kp["b2"], 0.0)
    head = jnp.dot(h2.astype(jnp.bfloat16), kp["wh"],
                   preferred_element_type=f32) + kp["bh"]
    probs = jax.nn.softmax(head[:, :A], axis=-1)
    value = head[:, A:A + 1]
    q = head[:, A + 1:2 * A + 1]
    return probs, value, q


def _max_abs_diff(a, b):
    return float(jnp.max(jnp.abs(a - b)))


# ----------------------------------------------------------------------------
# Self-test
# ----------------------------------------------------------------------------
if __name__ == "__main__":
    key = jax.random.PRNGKey(0)

    # --- small shapes consistent with the module's forward -------------------
    batch, state_dim, action_dim, hidden_dim = 2, 8, 4, 32
    k_param, k_state, k_big = jax.random.split(key, 3)

    raw = init_params(k_param, state_dim, action_dim, hidden_dim)
    kparams = pack_params(raw, action_dim)
    state = jax.random.normal(k_state, (batch, state_dim), dtype=jnp.float32)

    probs, value, q = qguided_forward(state, kparams)
    jax.block_until_ready((probs, value, q))

    assert probs.shape == (batch, action_dim)
    assert value.shape == (batch, 1)
    assert q.shape == (batch, action_dim)

    # matched-precision reference (tolerance covers the bf16 output-slab store)
    mp, mv, mq = reference_forward_matched(state, kparams, action_dim)
    assert _max_abs_diff(probs, mp) < 1e-2
    assert _max_abs_diff(value, mv) < 5e-2
    assert _max_abs_diff(q, mq) < 5e-2

    # pure-f32 reference (loose tolerance covering bf16 weight/activation cast)
    rp, rv, rq = reference_forward(state, raw)
    assert _max_abs_diff(probs, rp) < 1.5e-1
    assert _max_abs_diff(value, rv) < 1.5e-1
    assert _max_abs_diff(q, rq) < 1.5e-1

    # Newton-corrected reciprocal: probs sum to 1 within bf16 rounding
    assert _max_abs_diff(jnp.sum(probs, axis=-1), jnp.ones((batch,))) < 2e-2

    # --- larger batch to exercise multi-step grid + dual-TC parallel axis ----
    B_big, hid_big = 1040, 128
    raw_b = init_params(k_param, state_dim, action_dim, hid_big)
    kparams_b = pack_params(raw_b, action_dim)
    state_b = jax.random.normal(k_big, (B_big, state_dim), dtype=jnp.float32)

    pb, vb, qb = qguided_forward(state_b, kparams_b)
    jax.block_until_ready((pb, vb, qb))
    assert pb.shape == (B_big, action_dim)
    assert vb.shape == (B_big, 1)
    assert qb.shape == (B_big, action_dim)

    mpb, mvb, mqb = reference_forward_matched(state_b, kparams_b, action_dim)
    assert _max_abs_diff(pb, mpb) < 1e-2
    assert _max_abs_diff(vb, mvb) < 5e-2
    assert _max_abs_diff(qb, mqb) < 5e-2
    assert _max_abs_diff(jnp.sum(pb, axis=-1), jnp.ones((B_big,))) < 2e-2

    print("KERNEL_OK")
</pallas_src>

<mosaic_0001>
module attributes {stable_mosaic.version = 11 : i64} {
  func.func @_qguided_kernel(%arg0: i32, %arg1: memref<16x8xbf16, #tpu.memory_space<vmem>>, %arg2: memref<8x32xbf16, #tpu.memory_space<vmem>>, %arg3: memref<1x32xf32, #tpu.memory_space<vmem>>, %arg4: memref<32x16xbf16, #tpu.memory_space<vmem>>, %arg5: memref<1x16xf32, #tpu.memory_space<vmem>>, %arg6: memref<16x128xbf16, #tpu.memory_space<vmem>>, %arg7: memref<1x128xf32, #tpu.memory_space<vmem>>, %arg8: memref<16x128xbf16, #tpu.memory_space<vmem>>) attributes {dimension_semantics = [#tpu.dimension_semantics<parallel>], iteration_bounds = array<i64: 1>, scalar_prefetch = 0 : i64, scratch_operands = 0 : i64, tpu.core_type = #tpu.core_type<tc>, window_params = [{transform_indices = @transform_0, window_bounds = array<i64: 16, 8>}, {pipeline_mode = #tpu.pipeline_mode<synchronous>, transform_indices = @transform_1, window_bounds = array<i64: 8, 32>}, {pipeline_mode = #tpu.pipeline_mode<synchronous>, transform_indices = @transform_2, window_bounds = array<i64: 1, 32>}, {pipeline_mode = #tpu.pipeline_mode<synchronous>, transform_indices = @transform_3, window_bounds = array<i64: 32, 16>}, {pipeline_mode = #tpu.pipeline_mode<synchronous>, transform_indices = @transform_4, window_bounds = array<i64: 1, 16>}, {pipeline_mode = #tpu.pipeline_mode<synchronous>, transform_indices = @transform_5, window_bounds = array<i64: 16, 128>}, {pipeline_mode = #tpu.pipeline_mode<synchronous>, transform_indices = @transform_6, window_bounds = array<i64: 1, 128>}, {transform_indices = @transform_7, window_bounds = array<i64: 16, 128>}]} {
    %c0 = arith.constant 0 : index
    %c0_0 = arith.constant 0 : index
    %0 = vector.load %arg1[%c0, %c0_0] : memref<16x8xbf16, #tpu.memory_space<vmem>>, vector<16x8xbf16>
    %c0_1 = arith.constant 0 : index
    %c0_2 = arith.constant 0 : index
    %1 = vector.load %arg2[%c0_1, %c0_2] : memref<8x32xbf16, #tpu.memory_space<vmem>>, vector<8x32xbf16>
    %cst = arith.constant dense<0.000000e+00> : vector<16x32xf32>
    %2 = tpu.matmul %0, %1, %cst {dimension_numbers = #tpu.dot_dimension_numbers<[1], [0], [0], [1], [0, 0, 1, 1], [], []>} : vector<16x8xbf16>, vector<8x32xbf16>, vector<16x32xf32> -> vector<16x32xf32>
    %c0_3 = arith.constant 0 : index
    %c0_4 = arith.constant 0 : index
    %3 = vector.load %arg3[%c0_3, %c0_4] : memref<1x32xf32, #tpu.memory_space<vmem>>, vector<1x32xf32>
    %4 = vector.broadcast %3 : vector<1x32xf32> to vector<16x32xf32>
    %5 = arith.addf %2, %4 : vector<16x32xf32>
    %cst_5 = arith.constant 0.000000e+00 : f32
    %6 = vector.broadcast %cst_5 : f32 to vector<16x32xf32>
    %7 = arith.maximumf %5, %6 : vector<16x32xf32>
    %8 = arith.truncf %7 : vector<16x32xf32> to vector<16x32xbf16>
    %c0_6 = arith.constant 0 : index
    %c0_7 = arith.constant 0 : index
    %9 = vector.load %arg4[%c0_6, %c0_7] : memref<32x16xbf16, #tpu.memory_space<vmem>>, vector<32x16xbf16>
    %cst_8 = arith.constant dense<0.000000e+00> : vector<16x16xf32>
    %10 = tpu.matmul %8, %9, %cst_8 {dimension_numbers = #tpu.dot_dimension_numbers<[1], [0], [0], [1], [0, 0, 1, 1], [], []>} : vector<16x32xbf16>, vector<32x16xbf16>, vector<16x16xf32> -> vector<16x16xf32>
    %c0_9 = arith.constant 0 : index
    %c0_10 = arith.constant 0 : index
    %11 = vector.load %arg5[%c0_9, %c0_10] : memref<1x16xf32, #tpu.memory_space<vmem>>, vector<1x16xf32>
    %12 = vector.broadcast %11 : vector<1x16xf32> to vector<16x16xf32>
    %13 = arith.addf %10, %12 : vector<16x16xf32>
    %cst_11 = arith.constant 0.000000e+00 : f32
    %14 = vector.broadcast %cst_11 : f32 to vector<16x16xf32>
    %15 = arith.maximumf %13, %14 : vector<16x16xf32>
    %16 = arith.truncf %15 : vector<16x16xf32> to vector<16x16xbf16>
    %c0_12 = arith.constant 0 : index
    %c0_13 = arith.constant 0 : index
    %17 = vector.load %arg6[%c0_12, %c0_13] : memref<16x128xbf16, #tpu.memory_space<vmem>>, vector<16x128xbf16>
    %cst_14 = arith.constant dense<0.000000e+00> : vector<16x128xf32>
    %18 = tpu.matmul %16, %17, %cst_14 {dimension_numbers = #tpu.dot_dimension_numbers<[1], [0], [0], [1], [0, 0, 1, 1], [], []>} : vector<16x16xbf16>, vector<16x128xbf16>, vector<16x128xf32> -> vector<16x128xf32>
    %c0_15 = arith.constant 0 : index
    %c0_16 = arith.constant 0 : index
    %19 = vector.load %arg7[%c0_15, %c0_16] : memref<1x128xf32, #tpu.memory_space<vmem>>, vector<1x128xf32>
    %20 = vector.broadcast %19 : vector<1x128xf32> to vector<16x128xf32>
    %21 = arith.addf %18, %20 : vector<16x128xf32>
    %22 = tpu.iota {dimensions = array<i32: 1>} : vector<16x128xi32>
    %c4_i32 = arith.constant 4 : i32
    %23 = vector.broadcast %c4_i32 : i32 to vector<16x128xi32>
    %24 = arith.cmpi slt, %22, %23 : vector<16x128xi32>
    %cst_17 = arith.constant 0xFF800000 : f32
    %25 = vector.broadcast %cst_17 : f32 to vector<16x128xf32>
    %26 = arith.select %24, %21, %25 : vector<16x128xi1>, vector<16x128xf32>
    %cst_18 = arith.constant dense<0xFF800000> : vector<16xf32>
    %27 = vector.multi_reduction <maximumf>, %26, %cst_18 [1] : vector<16x128xf32> to vector<16xf32>
    %28 = vector.shape_cast %27 : vector<16xf32> to vector<16x1xf32>
    %29 = vector.broadcast %28 : vector<16x1xf32> to vector<16x128xf32>
    %30 = arith.subf %26, %29 : vector<16x128xf32>
    %31 = math.exp %30 : vector<16x128xf32>
    %cst_19 = arith.constant 0.000000e+00 : f32
    %32 = vector.broadcast %cst_19 : f32 to vector<16x128xf32>
    %33 = arith.select %24, %31, %32 : vector<16x128xi1>, vector<16x128xf32>
    %cst_20 = arith.constant dense<0.000000e+00> : vector<16xf32>
    %34 = vector.multi_reduction <add>, %33, %cst_20 [1] : vector<16x128xf32> to vector<16xf32>
    %35 = vector.shape_cast %34 : vector<16xf32> to vector<16x1xf32>
    %36 = tpu.reciprocal %35 {approx = true} : vector<16x1xf32> -> vector<16x1xf32>
    %37 = arith.mulf %35, %36 : vector<16x1xf32>
    %cst_21 = arith.constant 2.000000e+00 : f32
    %38 = vector.broadcast %cst_21 : f32 to vector<16x1xf32>
    %39 = arith.subf %38, %37 : vector<16x1xf32>
    %40 = arith.mulf %36, %39 : vector<16x1xf32>
    %41 = vector.broadcast %40 : vector<16x1xf32> to vector<16x128xf32>
    %42 = arith.mulf %33, %41 : vector<16x128xf32>
    %43 = arith.select %24, %42, %21 : vector<16x128xi1>, vector<16x128xf32>
    %44 = arith.truncf %43 : vector<16x128xf32> to vector<16x128xbf16>
    %c0_22 = arith.constant 0 : index
    %c0_23 = arith.constant 0 : index
    %45 = vector.load %arg8[%c0_22, %c0_23] : memref<16x128xbf16, #tpu.memory_space<vmem>>, vector<16x128xbf16>
    tpu.vector_store %arg8[%c0_22, %c0_23], %44 {strides = array<i32>} : memref<16x128xbf16, #tpu.memory_space<vmem>>, vector<16x128xbf16>,
    return
  }
  func.func @transform_0(%arg0: i32) -> (i32, i32) {
    %c0_i32 = arith.constant 0 : i32
    %c0_i32_0 = arith.constant 0 : i32
    return %arg0, %c0_i32 : i32, i32
  }
  func.func @transform_1(%arg0: i32) -> (i32, i32) {
    %c0_i32 = arith.constant 0 : i32
    %c0_i32_0 = arith.constant 0 : i32
    %c0_i32_1 = arith.constant 0 : i32
    return %c0_i32, %c0_i32_0 : i32, i32
  }
  func.func @transform_2(%arg0: i32) -> (i32, i32) {
    %c0_i32 = arith.constant 0 : i32
    %c0_i32_0 = arith.constant 0 : i32
    %c0_i32_1 = arith.constant 0 : i32
    return %c0_i32, %c0_i32_0 : i32, i32
  }
  func.func @transform_3(%arg0: i32) -> (i32, i32) {
    %c0_i32 = arith.constant 0 : i32
    %c0_i32_0 = arith.constant 0 : i32
    %c0_i32_1 = arith.constant 0 : i32
    return %c0_i32, %c0_i32_0 : i32, i32
  }
  func.func @transform_4(%arg0: i32) -> (i32, i32) {
    %c0_i32 = arith.constant 0 : i32
    %c0_i32_0 = arith.constant 0 : i32
    %c0_i32_1 = arith.constant 0 : i32
    return %c0_i32, %c0_i32_0 : i32, i32
  }
  func.func @transform_5(%arg0: i32) -> (i32, i32) {
    %c0_i32 = arith.constant 0 : i32
    %c0_i32_0 = arith.constant 0 : i32
    %c0_i32_1 = arith.constant 0 : i32
    return %c0_i32, %c0_i32_0 : i32, i32
  }
  func.func @transform_6(%arg0: i32) -> (i32, i32) {
    %c0_i32 = arith.constant 0 : i32
    %c0_i32_0 = arith.constant 0 : i32
    %c0_i32_1 = arith.constant 0 : i32
    return %c0_i32, %c0_i32_0 : i32, i32
  }
  func.func @transform_7(%arg0: i32) -> (i32, i32) {
    %c0_i32 = arith.constant 0 : i32
    %c0_i32_0 = arith.constant 0 : i32
    return %arg0, %c0_i32 : i32, i32
  }
}

</mosaic_0001>

<llo_original>
// kernel: tpu_custom_call.1
$region0: #{tpu_custom_call.1}
  #allocation0 [shape = 'u32[]', space=smem, size = 0x4, offset = 0x4, fixed_abs, tag = 'smem constant byte address 0x4 - core index']
  #allocation1 [shape = 'u32[144,128]{1,0:T(1,128)}', space=vmem, size = 0x12000, scoped, tag = 'internal scratch']
  %s0 = inlined_call_operand.vmem [shape: bf16[16,8], index: 0, kind: input, shape index: {}]
  %s1 = inlined_call_operand.vmem [shape: bf16[8,32], index: 1, kind: input, shape index: {}]
  %s2 = inlined_call_operand.vmem [shape: f32[1,32], index: 2, kind: input, shape index: {}]
  %s3 = inlined_call_operand.vmem [shape: bf16[32,16], index: 3, kind: input, shape index: {}]
  %s4 = inlined_call_operand.vmem [shape: f32[1,16], index: 4, kind: input, shape index: {}]
  %s5 = inlined_call_operand.vmem [shape: bf16[16,128], index: 5, kind: input, shape index: {}]
  %s6 = inlined_call_operand.vmem [shape: f32[1,128], index: 6, kind: input, shape index: {}]
  %s7 = inlined_call_operand.hbm [shape: bf16[16,128], index: 7, kind: output, shape index: {}]
  %s8 = sld [smem:[#allocation0]]
  $region38: #{tpu_custom_call.1} parent=0
    _
  %s10 = ssub.s32 1, %s8
  %s11 = scalar_select 0, %s10, %s8
  $region1: #{tpu_custom_call.1} parent=0
    #allocation2 [shape = 'u8[4096]{0}', space=vmem, size = 0x1000, scoped, tag = 'output window, operand 0, single buffered']
    #allocation3 [shape = 's32[1]{0}', space=sflag, size = 0x4, scoped, tag = 'scoped memory for tpu_custom_call.1']
    %12 = vsyncpa [#allocation3], 0
    // Predicated region
    $region2: #{tpu_custom_call.1} parent=1 // pred_check
      _
    $region3: #{tpu_custom_call.1} parent=1 // pred_check_branch
      %14 = sbr.rel (0) target = $region5
    $region4: #{tpu_custom_call.1} parent=1 // pred_region
      _
    $region5: #{tpu_custom_call.1} parent=1 // pred_fallthru
      _
    // Predicated region
    $region6: #{tpu_custom_call.1} parent=1 // pred_check
      _
    $region7: #{tpu_custom_call.1} parent=1 // pred_check_branch
      %16 = sbr.rel (0) target = $region9
    $region8: #{tpu_custom_call.1} parent=1 // pred_region
      _
    $region9: #{tpu_custom_call.1} parent=1 // pred_fallthru
      _
    // Predicated region
    $region10: #{tpu_custom_call.1} parent=1 // pred_check
      _
    $region11: #{tpu_custom_call.1} parent=1 // pred_check_branch
      %18 = sbr.rel (0) target = $region13
    $region12: #{tpu_custom_call.1} parent=1 // pred_region
      _
    $region13: #{tpu_custom_call.1} parent=1 // pred_fallthru
      _
    // Predicated region
    $region14: #{tpu_custom_call.1} parent=1 // pred_check
      _
    $region15: #{tpu_custom_call.1} parent=1 // pred_check_branch
      %20 = sbr.rel (0) target = $region17
    $region16: #{tpu_custom_call.1} parent=1 // pred_region
      _
    $region17: #{tpu_custom_call.1} parent=1 // pred_fallthru
      _
    // Predicated region
    $region18: #{tpu_custom_call.1} parent=1 // pred_check
      _
    $region19: #{tpu_custom_call.1} parent=1 // pred_check_branch
      %22 = sbr.rel (0) target = $region21
    $region20: #{tpu_custom_call.1} parent=1 // pred_region
      _
    $region21: #{tpu_custom_call.1} parent=1 // pred_fallthru
      _
    // Predicated region
    $region22: #{tpu_custom_call.1} parent=1 // pred_check
      _
    $region23: #{tpu_custom_call.1} parent=1 // pred_check_branch
      %24 = sbr.rel (0) target = $region25
    $region24: #{tpu_custom_call.1} parent=1 // pred_region
      _
    $region25: #{tpu_custom_call.1} parent=1 // pred_fallthru
      _
    // Predicated region
    $region26: #{tpu_custom_call.1} parent=1 // pred_check
      _
    $region27: #{tpu_custom_call.1} parent=1 // pred_check_branch
      %26 = sbr.rel (0) target = $region29
    $region28: #{tpu_custom_call.1} parent=1 // pred_region
      _
    $region29: #{tpu_custom_call.1} parent=1 // pred_fallthru
      _
    %v28 = vld [vmem:[%s0] sm:$0xf]
    %v29 = vld [vmem:[%s0 + $0x4] sm:$0xf]
    %v30 = vld [vmem:[%s1] sm:$0xf]
    %v31 = vld [vmem:[%s2] sm:$0x1]
    %v33 = vlaneseq
    %v34 = vshrl.u32 %v33, 7
    %v35 = vsub.s32 0, %v34
    %v36 = vrot.slane %v31, %v35
    %v40 = vunpack.c.l.b16 %v28
    %v41 = vunpack.c.l.b16 %v29
    %v42 = vpack.c.b16 %v41, %v40
    %vm43 = vcmask 64512
    %v45 = vsel %vm43, %v42, 0
    %vm47 = vcmask 1043456
    %v49 = vsel %vm47, %v30, 0
    %51 = vmatprep.subr.bf16.mxu0 0
    %52 = vmatpush1.bf16.msra.mxu0 %v49
    %53 = vmatprep.subr.bf16.mxu0 0
    %54 = vmatpush1.bf16.msra.mxu0 0
    %55 = vmatprep.subr.bf16.mxu0 0
    %56 = vmatpush1.bf16.msra.mxu0 0
    %57 = vmatprep.subr.bf16.mxu0 0
    %58 = vmatpush1.bf16.msra.mxu0 0
    %59 = vmatprep.subr.bf16.mxu0 0
    %60 = vmatpush1.bf16.msra.mxu0 0
    %61 = vmatprep.subr.bf16.mxu0 0
    %62 = vmatpush1.bf16.msra.mxu0 0
    %63 = vmatprep.subr.bf16.mxu0 0
    %64 = vmatpush1.bf16.msra.mxu0 0
    %65 = vmatprep.subr.bf16.mxu0 0
    %66 = vmatpush1.bf16.msra.mxu0 0
    %67 = vmatprep.subr.bf16.mxu0 0
    %68 = vmatpush1.bf16.msra.mxu0 0
    %69 = vmatprep.subr.bf16.mxu0 0
    %70 = vmatpush1.bf16.msra.mxu0 0
    %71 = vmatprep.subr.bf16.mxu0 0
    %72 = vmatpush1.bf16.msra.mxu0 0
    %73 = vmatprep.subr.bf16.mxu0 0
    %74 = vmatpush1.bf16.msra.mxu0 0
    %75 = vmatprep.subr.bf16.mxu0 0
    %76 = vmatpush1.bf16.msra.mxu0 0
    %77 = vmatprep.subr.bf16.mxu0 0
    %78 = vmatpush1.bf16.msra.mxu0 0
    %79 = vmatprep.subr.bf16.mxu0 0
    %80 = vmatpush1.bf16.msra.mxu0 0
    %81 = vmatprep.subr.bf16.mxu0 0
    %82 = vmatpush1.bf16.msra.mxu0 0
    %83 = vmatprep.mubr.bf16.mxu0 0
    %84 = vmatmul.mubr.bf16.gmra.mrb[0].mxu0 %v45
    %v85 = vpop.f32.mrb[0].mxu0
    %v86 = vadd.f32 %v36, %v85
    %v87 = vpop.f32.mrb[0].mxu0
    %v88 = vpop.f32.mrb[0].mxu0
    %v89 = vadd.f32 %v36, %v88
    %v90 = vpop.f32.mrb[0].mxu0
    %91 = vdwg.mxu0
    %v92 = vmax.f32 %v86, 0.0
    %v93 = vmax.f32 %v89, 0.0
    %v94 = vpack.c.bf16 %v93, %v92
    %v95 = vld [vmem:[%s3] sm:$0xf]
    %v96 = vld [vmem:[%s3 + $0x4] sm:$0xf]
    %v97 = vld [vmem:[%s3 + $0x8] sm:$0xf]
    %v98 = vld [vmem:[%s3 + $0xc] sm:$0xf]
    %v99 = vld [vmem:[%s4] sm:$0x1]
    %v101 = vlaneseq
    %v102 = vshrl.u32 %v101, 7
    %v103 = vsub.s32 0, %v102
    %v104 = vrot.slane %v99, %v103
    %v110 = vunpack.c.l.b16 %v95
    %v111 = vunpack.c.l.b16 %v96
    %v112 = vunpack.c.l.b16 %v97
    %v113 = vunpack.c.l.b16 %v98
    %v114 = vpack.c.b16 %v111, %v110
    %v115 = vpack.c.b16 %v113, %v112
    %vm118 = vcmask 261120
    %v120 = vsel %vm118, %v94, 0
    %122 = vmatprep.subr.bf16.mxu0 0
    %123 = vmatpush1.bf16.msra.mxu0 %v114
    %124 = vmatprep.subr.bf16.mxu0 0
    %125 = vmatpush1.bf16.msra.mxu0 %v115
    %126 = vmatprep.subr.bf16.mxu0 0
    %127 = vmatpush1.bf16.msra.mxu0 0
    %128 = vmatprep.subr.bf16.mxu0 0
    %129 = vmatpush1.bf16.msra.mxu0 0
    %130 = vmatprep.subr.bf16.mxu0 0
    %131 = vmatpush1.bf16.msra.mxu0 0
    %132 = vmatprep.subr.bf16.mxu0 0
    %133 = vmatpush1.bf16.msra.mxu0 0
    %134 = vmatprep.subr.bf16.mxu0 0
    %135 = vmatpush1.bf16.msra.mxu0 0
    %136 = vmatprep.subr.bf16.mxu0 0
    %137 = vmatpush1.bf16.msra.mxu0 0
    %138 = vmatprep.subr.bf16.mxu0 0
    %139 = vmatpush1.bf16.msra.mxu0 0
    %140 = vmatprep.subr.bf16.mxu0 0
    %141 = vmatpush1.bf16.msra.mxu0 0
    %142 = vmatprep.subr.bf16.mxu0 0
    %143 = vmatpush1.bf16.msra.mxu0 0
    %144 = vmatprep.subr.bf16.mxu0 0
    %145 = vmatpush1.bf16.msra.mxu0 0
    %146 = vmatprep.subr.bf16.mxu0 0
    %147 = vmatpush1.bf16.msra.mxu0 0
    %148 = vmatprep.subr.bf16.mxu0 0
    %149 = vmatpush1.bf16.msra.mxu0 0
    %150 = vmatprep.subr.bf16.mxu0 0
    %151 = vmatpush1.bf16.msra.mxu0 0
    %152 = vmatprep.subr.bf16.mxu0 0
    %153 = vmatpush1.bf16.msra.mxu0 0
    %154 = vmatprep.mubr.bf16.mxu0 0
    %155 = vmatmul.mubr.bf16.gmra.mrb[0].mxu0 %v120
    %v156 = vpop.f32.mrb[0].mxu0
    %v157 = vadd.f32 %v104, %v156
    %v158 = vpop.f32.mrb[0].mxu0
    %v159 = vpop.f32.mrb[0].mxu0
    %v160 = vadd.f32 %v104, %v159
    %v161 = vpop.f32.mrb[0].mxu0
    %162 = vdwg.mxu0
    %v163 = vmax.f32 %v157, 0.0
    %v164 = vmax.f32 %v160, 0.0
    %v165 = vpack.c.bf16 %v164, %v163
    %v166 = vld [vmem:[%s5] sm:$0xf]
    %v167 = vld [vmem:[%s5 + $0x4] sm:$0xf]
    %v168 = vld [vmem:[%s6] sm:$0x1]
    %v170 = vlaneseq
    %v171 = vshrl.u32 %v170, 7
    %v172 = vsub.s32 0, %v171
    %v173 = vrot.slane %v168, %v172
    %v177 = vunpack.c.l.b16 %v166
    %v178 = vunpack.c.l.b16 %v167
    %v179 = vpack.c.b16 %v178, %v177
    %vm181 = vcmask 130048
    %v183 = vsel %vm181, %v165, 0
    %185 = vmatprep.subr.bf16.mxu0 0
    %186 = vmatpush1.bf16.msra.mxu0 %v179
    %187 = vmatprep.subr.bf16.mxu0 0
    %188 = vmatpush1.bf16.msra.mxu0 0
    %189 = vmatprep.subr.bf16.mxu0 0
    %190 = vmatpush1.bf16.msra.mxu0 0
    %191 = vmatprep.subr.bf16.mxu0 0
    %192 = vmatpush1.bf16.msra.mxu0 0
    %193 = vmatprep.subr.bf16.mxu0 0
    %194 = vmatpush1.bf16.msra.mxu0 0
    %195 = vmatprep.subr.bf16.mxu0 0
    %196 = vmatpush1.bf16.msra.mxu0 0
    %197 = vmatprep.subr.bf16.mxu0 0
    %198 = vmatpush1.bf16.msra.mxu0 0
    %199 = vmatprep.subr.bf16.mxu0 0
    %200 = vmatpush1.bf16.msra.mxu0 0
    %201 = vmatprep.subr.bf16.mxu0 0
    %202 = vmatpush1.bf16.msra.mxu0 0
    %203 = vmatprep.subr.bf16.mxu0 0
    %204 = vmatpush1.bf16.msra.mxu0 0
    %205 = vmatprep.subr.bf16.mxu0 0
    %206 = vmatpush1.bf16.msra.mxu0 0
    %207 = vmatprep.subr.bf16.mxu0 0
    %208 = vmatpush1.bf16.msra.mxu0 0
    %209 = vmatprep.subr.bf16.mxu0 0
    %210 = vmatpush1.bf16.msra.mxu0 0
    %211 = vmatprep.subr.bf16.mxu0 0
    %212 = vmatpush1.bf16.msra.mxu0 0
    %213 = vmatprep.subr.bf16.mxu0 0
    %214 = vmatpush1.bf16.msra.mxu0 0
    %215 = vmatprep.subr.bf16.mxu0 0
    %216 = vmatpush1.bf16.msra.mxu0 0
    %217 = vmatprep.mubr.bf16.mxu0 0
    %218 = vmatmul.mubr.bf16.gmra.mrb[0].mxu0 %v183
    %v219 = vpop.f32.mrb[0].mxu0
    %v220 = vadd.f32 %v173, %v219
    %v221 = vpop.f32.mrb[0].mxu0
    %v222 = vpop.f32.mrb[0].mxu0
    %v223 = vadd.f32 %v173, %v222
    %v224 = vpop.f32.mrb[0].mxu0
    %225 = vdwg.mxu0
    %v226 = vlaneseq
    %v227 = vand.u32 %v226, 127
    %vm228 = vcmp.lt.s32.totalorder %v227, 4
    %v229 = vsel %vm228, %v220, -inf
    %v230 = vsel %vm228, %v223, -inf
    %231 = vmax.xlane.f32.xlu0 %v229
    %v232 = vpop.xlane.xlu0 %231
    %233 = vmax.xlane.f32.xlu0 %v230
    %v234 = vpop.xlane.xlu0 %233
    %v235 = vsub.f32 %v229, %v232
    %v236 = vsub.f32 %v230, %v234
    %v237 = vmul.f32 %v235, 1.442695
    %v238 = vpow.pop %v237
    %v239 = vmul.f32 %v236, 1.442695
    %v240 = vpow.pop %v239
    %v241 = vsel %vm228, %v238, 0.0
    %v242 = vsel %vm228, %v240, 0.0
    %243 = vadd.xlane.f32.xlu0 %v241
    %v244 = vpop.xlane.xlu0 %243
    %245 = vadd.xlane.f32.xlu0 %v242
    %v246 = vpop.xlane.xlu0 %245
    %v247 = vrcp.pop %v244
    %v248 = vrcp.pop %v246
    %v249 = vmul.f32 %v244, %v247
    %v250 = vmul.f32 %v246, %v248
    %v251 = vsub.f32 2.0, %v249
    %v252 = vsub.f32 2.0, %v250
    %v253 = vmul.f32 %v247, %v251
    %v254 = vmul.f32 %v248, %v252
    %v255 = vmul.f32 %v241, %v253
    %v256 = vmul.f32 %v242, %v254
    %v257 = vsel %vm228, %v255, %v220
    %v258 = vsel %vm228, %v256, %v223
    %v259 = vpack.c.bf16 %v258, %v257
    %v261 = vunpack.c.l.b16 %v259
    %v262 = vunpack.c.h.b16 %v259
    %v263 = vpack.c.b16 %v261, %v261
    %v264 = vpack.c.b16 %v262, %v262
    %267 = vst [vmem:[#allocation2] sm:$0xf] %v263
    %268 = vst [vmem:[#allocation2 + $0x4] sm:$0xf] %v264
    // Predicated region
    $region30: #{tpu_custom_call.1} parent=1 // pred_check
      _
    $region31: #{tpu_custom_call.1} parent=1 // pred_check_branch
      %270 = sbr.rel (0) target = $region33
    $region32: #{tpu_custom_call.1} parent=1 // pred_region
      %s272 = ssub.s32 128, 128
      %273 = vsyncadd [#allocation3], %s272
      %s274 = sshll.u32 [#allocation2], 4
      %s275 = int_to_ptr.vmem [resolvable:$true] %s274
      %280 = dma.vmem_to_hbm [thread:$0]  %s275, 128, %s7, [#allocation3], 64, 64, 4
    $region33: #{tpu_custom_call.1} parent=1 // pred_fallthru
      _
    // Predicated region
    $region34: #{tpu_custom_call.1} parent=1 // pred_check
      _
    $region35: #{tpu_custom_call.1} parent=1 // pred_check_branch
      %282 = sbr.rel (0) target = $region37
    $region36: #{tpu_custom_call.1} parent=1 // pred_region
      %283 = dma.done [#allocation3], 128
    $region37: #{tpu_custom_call.1} parent=1 // pred_fallthru
      _
    %284 = vsyncpa [#allocation3], 1

</llo_original>
